<compile_context>
chip_gen: v7x
topology: tpu7x:2x2x1
jax: 0.10.0
libtpu: 0.0.40
codegen_flags: <defaults>
</compile_context>

<pallas_src>
import jax
import jax.numpy as jnp
from jax.experimental import pallas as pl
from jax.experimental.pallas import tpu as pltpu


# ----------------------------------------------------------------------------
# Kernels
# ----------------------------------------------------------------------------
def _glu_split_kernel(a_ref, b_ref, o_ref):
    """GLU on pre-split halves: o = a * sigmoid(b).  Blocks are (TR, half)."""
    a = a_ref[...]
    # Sigmoid gate in f32 for accuracy; `a` stays in its native dtype so we do
    # not double the vreg live range with a second f32 temporary.
    gate = jax.nn.sigmoid(b_ref[...].astype(jnp.float32)).astype(a.dtype)
    o_ref[...] = (a * gate).astype(o_ref.dtype)


def _glu_fused_kernel(x_ref, o_ref):
    """Fallback: GLU on one full-F block (TR, F) -> (TR, F // 2)."""
    x = x_ref[...]
    half = x.shape[-1] // 2
    a = x[:, :half]
    b = x[:, half:]
    gate = jax.nn.sigmoid(b.astype(jnp.float32)).astype(a.dtype)
    o_ref[...] = (a * gate).astype(o_ref.dtype)


# ----------------------------------------------------------------------------
# Wrapper
# ----------------------------------------------------------------------------
# Per-step double-buffered working set budget; safe on v5e/v6e (128 MiB VMEM)
# and v7x (only 64 MiB VMEM), while keeping each grid step >= a few MiB of
# HBM traffic so per-step overhead (~0.35 us) stays negligible.
_VMEM_WORKING_SET_BUDGET = 24 * 1024 * 1024
# Above the 16 MiB (v5e) / 32 MiB (v6e/v7x) scoped defaults, below v7x's
# 64 MiB physical VMEM.
_VMEM_LIMIT_BYTES = 48 * 1024 * 1024


def _round_up(x, m):
    return ((x + m - 1) // m) * m


def _sublane_granule(dtype):
    bits = jnp.dtype(dtype).itemsize * 8
    if bits >= 32:
        return 8
    if bits == 16:
        return 16
    return 32


def glu(x, dim=-1):
    """Pallas GLU over the last axis (dim must resolve to the last axis)."""
    ndim = x.ndim
    if dim < 0:
        dim += ndim
    assert dim == ndim - 1, "this kernel implements GLU over the last axis"

    feat = x.shape[-1]
    assert feat % 2 == 0, "GLU requires an even feature dimension"
    half = feat // 2

    lead_shape = x.shape[:-1]
    rows = 1
    for s in lead_shape:
        rows *= s
    x2 = x.reshape(rows, feat)

    dtype_bytes = jnp.dtype(x.dtype).itemsize
    granule = _sublane_granule(x.dtype)

    # Working set per grid step (inputs + output, double-buffered):
    #   2 * (feat + half) * tile_rows * dtype_bytes = 6 * half * tile_rows * B
    bytes_per_row = 6 * half * dtype_bytes
    max_tile_rows = max(
        granule, (_VMEM_WORKING_SET_BUDGET // bytes_per_row) // granule * granule
    )

    if rows > max_tile_rows:
        tile_rows = max_tile_rows
    elif rows >= 2 * granule:
        # Ensure >= 2 grid steps so v7x can shard the row axis over its 2 TCs.
        tile_rows = _round_up(-(-rows // 2), granule)
    else:
        tile_rows = rows  # equal to the full dim -> always a legal block

    grid = (pl.cdiv(rows, tile_rows),)

    lane_aligned = (half % 128) == 0
    # TODO(synk): when half % 128 != 0 the output stores are masked (vst.msk);
    # folding rows into the lane axis would make them lane-dense but needs an
    # interleave-aware relayout, so we keep the simple full-F fallback there.

    out_spec = pl.BlockSpec((tile_rows, half), lambda i: (i, 0))
    if lane_aligned:
        kernel = _glu_split_kernel
        in_specs = [
            pl.BlockSpec((tile_rows, half), lambda i: (i, 0)),  # a = x[:, :half]
            pl.BlockSpec((tile_rows, half), lambda i: (i, 1)),  # b = x[:, half:]
        ]
        operands = (x2, x2)
    else:
        kernel = _glu_fused_kernel
        in_specs = [pl.BlockSpec((tile_rows, feat), lambda i: (i, 0))]
        operands = (x2,)

    out2 = pl.pallas_call(
        kernel,
        out_shape=jax.ShapeDtypeStruct((rows, half), x.dtype),
        grid_spec=pltpu.PrefetchScalarGridSpec(
            num_scalar_prefetch=0,
            grid=grid,
            in_specs=in_specs,
            out_specs=out_spec,
        ),
        compiler_params=pltpu.CompilerParams(
            dimension_semantics=("parallel",),
            vmem_limit_bytes=_VMEM_LIMIT_BYTES,
        ),
    )(*operands)

    return out2.reshape(*lead_shape, half)


# ----------------------------------------------------------------------------
# Demo / self-check
# ----------------------------------------------------------------------------
if __name__ == "__main__":
    key0, key1 = jax.random.split(jax.random.PRNGKey(0))

    # 1) Small shape from the module contract (*, features): (2, 8, 32).
    #    half = 16 -> exercises the fused fallback path + ragged-safe tiling.
    x_small = jax.random.normal(key0, (2, 8, 32), dtype=jnp.float32)
    out_small = glu(x_small)
    jax.block_until_ready(out_small)
    a_s, b_s = jnp.split(x_small, 2, axis=-1)
    ref_small = a_s * jax.nn.sigmoid(b_s)
    assert out_small.shape == (2, 8, 16)
    assert jnp.allclose(out_small, ref_small, atol=1e-5, rtol=1e-5)

    # 2) 128-aligned half: (4, 128, 256) -> half = 128 exercises the
    #    two-input lane-aligned fast path with a multi-step grid.
    x_big = jax.random.normal(key1, (4, 128, 256), dtype=jnp.float32)
    out_big = glu(x_big)
    jax.block_until_ready(out_big)
    a_b, b_b = jnp.split(x_big, 2, axis=-1)
    ref_big = a_b * jax.nn.sigmoid(b_b)
    assert out_big.shape == (4, 128, 128)
    assert jnp.allclose(out_big, ref_big, atol=1e-5, rtol=1e-5)

    print("KERNEL_OK")
</pallas_src>

<mosaic_0001>
module attributes {stable_mosaic.version = 11 : i64} {
  func.func @_glu_fused_kernel(%arg0: i32, %arg1: memref<8x32xf32, #tpu.memory_space<vmem>>, %arg2: memref<8x16xf32, #tpu.memory_space<vmem>>) attributes {dimension_semantics = [#tpu.dimension_semantics<parallel>], iteration_bounds = array<i64: 2>, scalar_prefetch = 0 : i64, scratch_operands = 0 : i64, tpu.core_type = #tpu.core_type<tc>, window_params = [{transform_indices = @transform_0, window_bounds = array<i64: 8, 32>}, {transform_indices = @transform_1, window_bounds = array<i64: 8, 16>}]} {
    %c0 = arith.constant 0 : index
    %c0_0 = arith.constant 0 : index
    %0 = vector.load %arg1[%c0, %c0_0] : memref<8x32xf32, #tpu.memory_space<vmem>>, vector<8x32xf32>
    %1 = vector.extract_strided_slice %0 {offsets = [0, 0], sizes = [8, 16], strides = [1, 1]} : vector<8x32xf32> to vector<8x16xf32>
    %2 = vector.extract_strided_slice %0 {offsets = [0, 16], sizes = [8, 16], strides = [1, 1]} : vector<8x32xf32> to vector<8x16xf32>
    %3 = arith.negf %2 : vector<8x16xf32>
    %4 = math.exp %3 : vector<8x16xf32>
    %cst = arith.constant 1.000000e+00 : f32
    %5 = vector.broadcast %cst : f32 to vector<8x16xf32>
    %6 = arith.addf %5, %4 : vector<8x16xf32>
    %7 = arith.divf %5, %6 : vector<8x16xf32>
    %8 = arith.mulf %1, %7 : vector<8x16xf32>
    %c0_1 = arith.constant 0 : index
    %c0_2 = arith.constant 0 : index
    %9 = vector.load %arg2[%c0_1, %c0_2] : memref<8x16xf32, #tpu.memory_space<vmem>>, vector<8x16xf32>
    tpu.vector_store %arg2[%c0_1, %c0_2], %8 {strides = array<i32>} : memref<8x16xf32, #tpu.memory_space<vmem>>, vector<8x16xf32>,
    return
  }
  func.func @transform_0(%arg0: i32) -> (i32, i32) {
    %c0_i32 = arith.constant 0 : i32
    %c0_i32_0 = arith.constant 0 : i32
    return %arg0, %c0_i32 : i32, i32
  }
  func.func @transform_1(%arg0: i32) -> (i32, i32) {
    %c0_i32 = arith.constant 0 : i32
    %c0_i32_0 = arith.constant 0 : i32
    return %arg0, %c0_i32 : i32, i32
  }
}

</mosaic_0001>

<llo_original>
// kernel: tpu_custom_call.1
$region0: #{tpu_custom_call.1}
  #allocation0 [shape = 'u32[]', space=smem, size = 0x4, offset = 0x4, fixed_abs, tag = 'smem constant byte address 0x4 - core index']
  #allocation1 [shape = 'u32[144,128]{1,0:T(1,128)}', space=vmem, size = 0x12000, scoped, tag = 'internal scratch']
  %s0 = inlined_call_operand.hbm [shape: f32[16,32], index: 0, kind: input, shape index: {}]
  %s1 = inlined_call_operand.hbm [shape: f32[16,16], index: 1, kind: output, shape index: {}]
  %s2 = sld [smem:[#allocation0]]
  $region41: #{tpu_custom_call.1} parent=0
    _
  %s4 = ssub.s32 1, %s2
  %s5 = scalar_select 0, %s4, %s2
  $region1: #{tpu_custom_call.1} parent=0
    #allocation2 [shape = 'u8[8192]{0}', space=vmem, size = 0x2000, scoped, tag = 'input window, operand 0']
    #allocation3 [shape = 's32[2]{0}', space=sflag, size = 0x8, scoped, tag = 'scoped memory for tpu_custom_call.1']
    #allocation4 [shape = 's32[2]{0}', space=sflag, size = 0x8, scoped, tag = 'scoped memory for tpu_custom_call.1']
    #allocation5 [shape = 'u8[8192]{0}', space=vmem, size = 0x2000, scoped, tag = 'output window, operand 0']
    %6 = vsyncpa [#allocation3], 0
    %s7 = scalar_lea.sflag [#allocation3], 1
    %8 = vsyncpa %s7, 0
    %9 = vsyncpa [#allocation4], 0
    %s10 = scalar_lea.sflag [#allocation4], 1
    %11 = vsyncpa %s10, 0
    loop: start=0, step=1, limit=4
    $region2: #{tpu_custom_call.1} parent=1 // loop_pre_header
      _
    $region3: #{tpu_custom_call.1} parent=1 // loop_header
      %s13 = sphi 0, %s17
      %p14 = scmp.ge.s32.totalorder %s13, 4
      %s23 = sphi 0, %s25
      %s26 = sphi 0, %s23
      %s27 = sphi 0, %s26
      %s43 = sphi 0, %s27
      %s49 = sphi 0, %s51
      %s52 = sphi 0, %s49
      %s53 = sphi 0, %s52
      %s69 = sphi 0, %s53
    $region4: #{tpu_custom_call.1} parent=1 // loop_header_branch
      %16 = sbr.rel (%p14) target = $region8
    $region5: #{tpu_custom_call.1} parent=1 // loop_body
      %s18 = ssub.s32 %s13, 1
      %s19 = ssub.s32 %s13, 2
      %s20 = sadd.s32 %s13, 1
      %s21 = ssub.s32 %s13, %s20
      %p22 = scmp.eq.s32.totalorder %s21, 0
      %s24 = sadd.s32 %s23, 1
      %s25 = scalar_select %p22, %s23, %s24
      %p28 = pneg %p22
      %p29 = scmp.eq.s32.totalorder %s13, 1
      %p30 = por %p28, %p29
      %p31 = scmp.ne.s32.totalorder %s23, %s26
      %p32 = scmp.eq.s32.totalorder %s13, 0
      %p33 = por %p31, %p32
      %p34 = scmp.ne.s32.totalorder %s23, %s26
      %p35 = scmp.eq.s32.totalorder %s18, 1
      %p36 = por %p34, %p35
      %p37 = scmp.ne.s32.totalorder %s26, %s27
      %p38 = scmp.eq.s32.totalorder %s18, 0
      %p39 = por %p37, %p38
      %p40 = scmp.ne.s32.totalorder %s26, %s27
      %p41 = scmp.eq.s32.totalorder %s19, 1
      %p42 = por %p40, %p41
      %p44 = scmp.ne.s32.totalorder %s27, %s43
      %p45 = scmp.eq.s32.totalorder %s19, 0
      %p46 = por %p44, %p45
      %s47 = ssub.s32 %s13, %s20
      %p48 = scmp.eq.s32.totalorder %s47, 0
      %s50 = sadd.s32 %s49, 1
      %s51 = scalar_select %p48, %s49, %s50
      %p54 = pneg %p48
      %p55 = scmp.eq.s32.totalorder %s13, 1
      %p56 = por %p54, %p55
      %p57 = scmp.ne.s32.totalorder %s49, %s52
      %p58 = scmp.eq.s32.totalorder %s13, 0
      %p59 = por %p57, %p58
      %p60 = scmp.ne.s32.totalorder %s49, %s52
      %p61 = scmp.eq.s32.totalorder %s18, 1
      %p62 = por %p60, %p61
      %p63 = scmp.ne.s32.totalorder %s52, %s53
      %p64 = scmp.eq.s32.totalorder %s18, 0
      %p65 = por %p63, %p64
      %p66 = scmp.ne.s32.totalorder %s52, %s53
      %p67 = scmp.eq.s32.totalorder %s19, 1
      %p68 = por %p66, %p67
      %p70 = scmp.ne.s32.totalorder %s53, %s69
      %p71 = scmp.eq.s32.totalorder %s19, 0
      %p72 = por %p70, %p71
      %p73 = scmp.le.s32.totalorder 1, %s13
      %p74 = scmp.lt.s32.totalorder %s13, 3
      %p75 = pnand %p73, %p74
      %p76 = pneg %p75
      // Predicated region
      $region9: #{tpu_custom_call.1} parent=5 // pred_check
        _
      $region10: #{tpu_custom_call.1} parent=5 // pred_check_branch
        %78 = sbr.rel (%p75) target = $region12
      $region11: #{tpu_custom_call.1} parent=5 // pred_region
        %s79 = ssub.s32 %s13, 1
      $region12: #{tpu_custom_call.1} parent=5 // pred_fallthru
        _
      %p80 = scmp.lt.s32.totalorder %s13, 2
      // Predicated region
      $region13: #{tpu_custom_call.1} parent=5 // pred_check
        %p81 = pneg %p80
      $region14: #{tpu_custom_call.1} parent=5 // pred_check_branch
        %83 = sbr.rel (%p81) target = $region16
      $region15: #{tpu_custom_call.1} parent=5 // pred_region
        // Predicated region
        $region17: #{tpu_custom_call.1} parent=15 // pred_check
          %p84 = pneg %p33
        $region18: #{tpu_custom_call.1} parent=15 // pred_check_branch
          %86 = sbr.rel (%p84) target = $region20
        $region19: #{tpu_custom_call.1} parent=15 // pred_region
          %s87 = sand.u32 %s23, 1
          %s88 = scalar_lea.sflag [#allocation3], %s87
          %s89 = sand.u32 %s23, 1
          %s90 = smul.addr %s89, 8
          %s91 = scalar_lea.vmem [#allocation2], %s90
          %s93 = ssub.s32 128, 128
          %94 = vsyncadd %s88, %s93
          %s95 = smul.addr %s13, 128
          %s96 = scalar_lea.hbm %s0, %s95
          %s98 = sshll.u32 %s91, 4
          %s99 = int_to_ptr.vmem [resolvable:$true] %s98
          %101 = dma.hbm_to_vmem [thread:$0]  %s96, 128, %s99, %s88
        $region20: #{tpu_custom_call.1} parent=15 // pred_fallthru
          _
      $region16: #{tpu_custom_call.1} parent=5 // pred_fallthru
        _
      %p102 = scmp.le.s32.totalorder 1, %s13
      %p103 = scmp.lt.s32.totalorder %s13, 3
      %p104 = pnand %p102, %p103
      %p105 = pneg %p104
      // Predicated region
      $region21: #{tpu_custom_call.1} parent=5 // pred_check
        _
      $region22: #{tpu_custom_call.1} parent=5 // pred_check_branch
        %107 = sbr.rel (%p104) target = $region24
      $region23: #{tpu_custom_call.1} parent=5 // pred_region
        %s108 = ssub.s32 %s13, 1
        %s109 = sand.u32 %s26, 1
        %s110 = scalar_lea.sflag [#allocation3], %s109
        %s111 = sand.u32 %s26, 1
        %s112 = smul.addr %s111, 8
        %s113 = scalar_lea.vmem [#allocation2], %s112
        // Predicated region
        $region25: #{tpu_custom_call.1} parent=23 // pred_check
          %p114 = pneg %p39
        $region26: #{tpu_custom_call.1} parent=23 // pred_check_branch
          %116 = sbr.rel (%p114) target = $region28
        $region27: #{tpu_custom_call.1} parent=23 // pred_region
          %117 = dma.done %s110, 128
        $region28: #{tpu_custom_call.1} parent=23 // pred_fallthru
          _
        %s118 = sand.u32 %s26, 1
        %s119 = scalar_lea.sflag [#allocation3], %s118
        %s120 = sand.u32 %s26, 1
        %s121 = smul.addr %s120, 8
        %s122 = scalar_lea.vmem [#allocation2], %s121
        %p123 = pneg %p39
        %p124 = pneg %p36
        %p125 = pneg %p65
        %p126 = pneg %p62
        %s127 = sand.u32 %s52, 1
        %s128 = scalar_lea.sflag [#allocation4], %s127
        %s129 = sand.u32 %s52, 1
        %s130 = smul.addr %s129, 8
        %s131 = scalar_lea.vmem [#allocation5], %s130
        %v132 = vld [vmem:[%s113] sm:$0xff]
        %v133 = vxor.u32 %v132, 2147483648
        %v134 = vmul.f32 %v133, 1.442695
        %v135 = vpow.pop %v134
        %v136 = vadd.f32 %v135, 1.0
        %v137 = vrcp.pop %v136
        %v138 = vmul.f32 1.0, %v137
        %140 = vrot.lane.b32.xlu0 %v138, 112
        %v141 = vpop.permute.xlu0 %140
        %v143 = vmul.f32 %v132, %v141
        %vm144 = vcmask 130048
        %145 = vst.msk [vmem:[%s131] sm:$0xff] %vm144, %v143
        %s146 = sand.u32 %s52, 1
        %s147 = scalar_lea.sflag [#allocation4], %s146
        %s148 = sand.u32 %s52, 1
        %s149 = smul.addr %s148, 8
        %s150 = scalar_lea.vmem [#allocation5], %s149
        // Predicated region
        $region29: #{tpu_custom_call.1} parent=23 // pred_check
          %p151 = pneg %p62
        $region30: #{tpu_custom_call.1} parent=23 // pred_check_branch
          %153 = sbr.rel (%p151) target = $region32
        $region31: #{tpu_custom_call.1} parent=23 // pred_region
          %s155 = ssub.s32 128, 128
          %156 = vsyncadd %s147, %s155
          %s157 = smul.addr %s18, 128
          %s158 = scalar_lea.hbm %s1, %s157
          %s160 = sshll.u32 %s150, 4
          %s161 = int_to_ptr.vmem [resolvable:$true] %s160
          %163 = dma.vmem_to_hbm [thread:$0]  %s161, 128, %s158, %s147
        $region32: #{tpu_custom_call.1} parent=23 // pred_fallthru
          _
      $region24: #{tpu_custom_call.1} parent=5 // pred_fallthru
        _
      %p164 = scmp.le.s32.totalorder 2, %s13
      // Predicated region
      $region33: #{tpu_custom_call.1} parent=5 // pred_check
        %p165 = pneg %p164
      $region34: #{tpu_custom_call.1} parent=5 // pred_check_branch
        %167 = sbr.rel (%p165) target = $region36
      $region35: #{tpu_custom_call.1} parent=5 // pred_region
        %s168 = ssub.s32 %s13, 2
        // Predicated region
        $region37: #{tpu_custom_call.1} parent=35 // pred_check
          %p169 = pneg %p68
        $region38: #{tpu_custom_call.1} parent=35 // pred_check_branch
          %171 = sbr.rel (%p169) target = $region40
        $region39: #{tpu_custom_call.1} parent=35 // pred_region
          %s172 = sand.u32 %s53, 1
          %s173 = scalar_lea.sflag [#allocation4], %s172
          %s174 = sand.u32 %s53, 1
          %s175 = smul.addr %s174, 8
          %s176 = scalar_lea.vmem [#allocation5], %s175
          %177 = dma.done %s173, 128
        $region40: #{tpu_custom_call.1} parent=35 // pred_fallthru
          _
      $region36: #{tpu_custom_call.1} parent=5 // pred_fallthru
        _
    $region6: #{tpu_custom_call.1} parent=1 // loop_footer
      %s17 = sadd.s32 1, %s13
    $region7: #{tpu_custom_call.1} parent=1 // loop_footer_branch
      %12 = sbr.rel target = $region3
    $region8: #{tpu_custom_call.1} parent=1 // loop_exit
      _
    %178 = vsyncpa [#allocation3], 1
    %s179 = scalar_lea.sflag [#allocation3], 1
    %180 = vsyncpa %s179, 1
    %181 = vsyncpa [#allocation4], 1
    %s182 = scalar_lea.sflag [#allocation4], 1
    %183 = vsyncpa %s182, 1

</llo_original>
